<compile_context>
chip_gen: v6e
topology: v6e:2x2x1
jax: 0.10.0
libtpu: 0.0.40
codegen_flags: <defaults>
</compile_context>

<pallas_src>
import functools

import jax
import jax.numpy as jnp
from jax.experimental import pallas as pl
from jax.experimental.pallas import tpu as pltpu


_MAX_CLASS_TILE = 2048            # lanes per class block when tiling the class axis
_MAX_ROW_TILE = 8192              # hard cap on rows per block
_VMEM_BUDGET = 12 * 1024 * 1024   # total VMEM target (blocks + scratch), all chips
_VMEM_LIMIT = 32 * 1024 * 1024    # explicit scoped-VMEM hint (safe on v5e/v6e/v7x)


def _round_up(v, m):
    return (v + m - 1) // m * m


def _label_smoothing_kernel(
    x_ref, t_ref, o_ref,
    m_s, l_s, rsum_s, xt_s,
    *, smoothing, n_total, c_total, row_tile, class_tile,
):
    i = pl.program_id(0)   # row-tile index ("parallel")
    k = pl.program_id(1)   # class-tile index (reduction axis, last, "arbitrary")
    nk = pl.num_programs(1)

    # Per-row-tile online-LSE state: init at the first class block of each row tile.
    @pl.when(k == 0)
    def _():
        m_s[...] = jnp.full(m_s.shape, -jnp.inf, dtype=jnp.float32)
        l_s[...] = jnp.zeros_like(l_s)
        rsum_s[...] = jnp.zeros_like(rsum_s)
        xt_s[...] = jnp.zeros_like(xt_s)

    x = x_ref[...].astype(jnp.float32)   # (TM, TC)
    t = t_ref[...]                       # (TM, 1) int32

    # Local lane index within this class block; the target is shifted into the
    # block's frame instead (a (TM,1) op) -- saves a (TM,TC) per-element add.
    local_col = jax.lax.broadcasted_iota(jnp.int32, x.shape, 1)
    t_local = t - k * class_tile         # (TM, 1)

    def update(x_for_exp, x_for_sum):
        # Online log-sum-exp (running max / rescaled running sum of exp).
        blk_max = jnp.max(x_for_exp, axis=-1, keepdims=True)
        m_new = jnp.maximum(m_s[...], blk_max)
        alpha = jnp.exp(m_s[...] - m_new)
        l_s[...] = l_s[...] * alpha + jnp.sum(
            jnp.exp(x_for_exp - m_new), axis=-1, keepdims=True)
        m_s[...] = m_new
        # Running class sum (for the smoothing term).
        # TODO(synk): if bundle dumps show the XLU as the binding unit, move this
        # lane reduction onto the idle MXU via a ones-matrix matmul.
        rsum_s[...] += jnp.sum(x_for_sum, axis=-1, keepdims=True)
        # x[target] via one-hot compare against the local lane iota.  Valid
        # targets (in [0, C)) never land on padded lanes, so no extra masking.
        xt_s[...] += jnp.sum(jnp.where(local_col == t_local, x, jnp.float32(0.0)),
                             axis=-1, keepdims=True)

    rem = c_total % class_tile
    if rem == 0:
        # Every class block is full: zero column-masking VPU work.
        update(x, x)
    else:
        # Only the (statically known) last class block is ragged.
        @pl.when(k < nk - 1)
        def _():
            update(x, x)

        @pl.when(k == nk - 1)
        def _():
            col_ok = local_col < rem
            update(jnp.where(col_ok, x, jnp.float32(-jnp.inf)),
                   jnp.where(col_ok, x, jnp.float32(0.0)))

    # Finalize this row tile on the last class block: each row tile writes its
    # own partial sum (no shared accumulator => row axis can be "parallel").
    @pl.when(k == nk - 1)
    def _():
        lse = m_s[...] + jnp.log(l_s[...])                       # (TM, 1)
        confidence = jnp.float32(1.0 - smoothing)
        # loss_row = conf*(lse - x_t) + smooth*(lse - rowsum/C)
        #          = lse - conf*x_t - smooth*rowsum/C     (conf + smooth == 1)
        per_row = lse - (confidence * xt_s[...]
                         + jnp.float32(smoothing / c_total) * rsum_s[...])
        if n_total % row_tile != 0:
            # Mask rows past N (only the last row block can overhang).
            row = (jax.lax.broadcasted_iota(jnp.int32, per_row.shape, 0)
                   + i * row_tile)
            per_row = jnp.where(row < n_total, per_row, jnp.float32(0.0))
        o_ref[0, 0] = jnp.sum(per_row)


def label_smoothing_loss(x, target, smoothing=0.01, row_tile=None, class_tile=None):
    """x: (N, C) float logits; target: (N,) int class indices. Returns scalar f32."""
    n, c = x.shape
    itemsize = jnp.dtype(x.dtype).itemsize
    # Packed sublane tile for the input dtype: 8 (f32), 16 (bf16), 32 (int8).
    sublane = max(8, 32 // itemsize)

    if class_tile is None:
        class_tile = c if c <= _MAX_CLASS_TILE else _MAX_CLASS_TILE
    if class_tile != c:
        assert class_tile % 128 == 0, "class_tile must be a multiple of 128 (or == C)"

    if row_tile is None:
        # Real per-row VMEM footprint: double-buffered x block + double-buffered
        # (row,1) target block + four (row,1) f32 scratches; every (row,1)
        # buffer pads to 128 lanes in VMEM.
        bytes_per_row = 2 * class_tile * itemsize + (2 + 4) * 128 * 4
        budget_rows = (_VMEM_BUDGET // bytes_per_row) // sublane * sublane
        row_tile = int(min(max(budget_rows, sublane), _MAX_ROW_TILE,
                           _round_up(n, sublane)))
    assert row_tile % sublane == 0, (
        f"row_tile must be a multiple of {sublane} for dtype {x.dtype}")

    t2d = target.astype(jnp.int32).reshape(n, 1)

    kernel = functools.partial(
        _label_smoothing_kernel,
        smoothing=float(smoothing), n_total=n, c_total=c,
        row_tile=row_tile, class_tile=class_tile,
    )

    grid = (pl.cdiv(n, row_tile), pl.cdiv(c, class_tile))
    num_row_tiles = grid[0]

    partials = pl.pallas_call(
        kernel,
        out_shape=jax.ShapeDtypeStruct((num_row_tiles, 1), jnp.float32),
        grid_spec=pltpu.PrefetchScalarGridSpec(
            num_scalar_prefetch=0,
            grid=grid,
            in_specs=[
                pl.BlockSpec((row_tile, class_tile), lambda i, k: (i, k)),
                pl.BlockSpec((row_tile, 1), lambda i, k: (i, 0)),
            ],
            out_specs=pl.BlockSpec(
                (1, 1), lambda i, k: (i, 0), memory_space=pltpu.SMEM
            ),
            scratch_shapes=[
                pltpu.VMEM((row_tile, 1), jnp.float32),  # running max m
                pltpu.VMEM((row_tile, 1), jnp.float32),  # running sum-of-exp l
                pltpu.VMEM((row_tile, 1), jnp.float32),  # running row sum of x
                pltpu.VMEM((row_tile, 1), jnp.float32),  # running x[target]
            ],
        ),
        compiler_params=pltpu.CompilerParams(
            # Row tiles independent => parallel (sharded across TCs on v7x);
            # class axis carries the online reduction => arbitrary.
            dimension_semantics=("parallel", "arbitrary"),
            vmem_limit_bytes=_VMEM_LIMIT,
        ),
        cost_estimate=pl.CostEstimate(
            flops=6 * n * c,
            transcendentals=n * c,
            bytes_accessed=n * c * itemsize + n * 4 + num_row_tiles * 4,
        ),
    )(x, t2d)

    # Tiny final reduction + 1/N mean in JAX (num_row_tiles elements).
    return jnp.sum(partials) * jnp.float32(1.0 / n)


def _reference(x, target, smoothing=0.01):
    log_probs = jax.nn.log_softmax(x.astype(jnp.float32), axis=-1)
    nll = -jnp.take_along_axis(
        log_probs, target[:, None].astype(jnp.int32), axis=-1)[:, 0]
    smooth = -jnp.mean(log_probs, axis=-1)
    loss = (1.0 - smoothing) * nll + smoothing * smooth
    return jnp.mean(loss)


if __name__ == "__main__":
    key = jax.random.PRNGKey(0)

    # (N, C, dtype, explicit row_tile, explicit class_tile, atol)
    cases = [
        (16, 32, jnp.float32, None, None, 1e-5),    # small, single tile
        (50, 37, jnp.float32, None, None, 1e-5),    # ragged rows + full (non-128) class dim
        (24, 300, jnp.float32, None, 128, 1e-5),    # forced class tiling + ragged last class block
        (200, 64, jnp.float32, 64, None, 1e-5),     # multiple (parallel) row tiles + row masking
        (50, 160, jnp.bfloat16, None, None, 1e-4),  # bf16 logits (16-row packed sublane tile)
    ]

    for idx, (N, C, dt, rt, ct, atol) in enumerate(cases):
        key, kx, kt = jax.random.split(key, 3)
        x = jax.random.normal(kx, (N, C), dtype=jnp.float32).astype(dt)
        target = jax.random.randint(kt, (N,), 0, C, dtype=jnp.int32)

        loss = label_smoothing_loss(x, target, smoothing=0.01,
                                    row_tile=rt, class_tile=ct)
        loss = jax.block_until_ready(loss)

        ref = _reference(x, target, smoothing=0.01)
        assert jnp.allclose(loss, ref, atol=atol, rtol=1e-4), (idx, loss, ref)

    print("KERNEL_OK")
</pallas_src>

<mosaic_0001>
module attributes {stable_mosaic.version = 11 : i64} {
  func.func @_label_smoothing_kernel(%arg0: i32, %arg1: i32, %arg2: memref<16x32xf32, #tpu.memory_space<vmem>>, %arg3: memref<16x1xi32, #tpu.memory_space<vmem>>, %arg4: memref<1x1xf32, #tpu.memory_space<smem>>, %arg5: memref<16x1xf32, #tpu.memory_space<vmem>>, %arg6: memref<16x1xf32, #tpu.memory_space<vmem>>, %arg7: memref<16x1xf32, #tpu.memory_space<vmem>>, %arg8: memref<16x1xf32, #tpu.memory_space<vmem>>) attributes {dimension_semantics = [#tpu.dimension_semantics<parallel>, #tpu.dimension_semantics<arbitrary>], iteration_bounds = array<i64: 1, 1>, scalar_prefetch = 0 : i64, scratch_operands = 4 : i64, tpu.core_type = #tpu.core_type<tc>, window_params = [{transform_indices = @transform_0, window_bounds = array<i64: 16, 32>}, {transform_indices = @transform_1, window_bounds = array<i64: 16, 1>}, {transform_indices = @transform_2, window_bounds = array<i64: 1, 1>}]} {
    %c0_i32 = arith.constant 0 : i32
    %0 = arith.cmpi eq, %arg1, %c0_i32 : i32
    %1 = arith.extui %0 : i1 to i32
    %c0_i32_0 = arith.constant 0 : i32
    %2 = arith.cmpi ne, %1, %c0_i32_0 : i32
    scf.if %2 {
      %cst_28 = arith.constant 0xFF800000 : f32
      %43 = vector.broadcast %cst_28 : f32 to vector<16x1xf32>
      %c0_29 = arith.constant 0 : index
      %c0_30 = arith.constant 0 : index
      %44 = vector.load %arg5[%c0_29, %c0_30] : memref<16x1xf32, #tpu.memory_space<vmem>>, vector<16x1xf32>
      tpu.vector_store %arg5[%c0_29, %c0_30], %43 {strides = array<i32>} : memref<16x1xf32, #tpu.memory_space<vmem>>, vector<16x1xf32>,
      %cst_31 = arith.constant 0.000000e+00 : f32
      %45 = vector.broadcast %cst_31 : f32 to vector<16x1xf32>
      %c0_32 = arith.constant 0 : index
      %c0_33 = arith.constant 0 : index
      %46 = vector.load %arg6[%c0_32, %c0_33] : memref<16x1xf32, #tpu.memory_space<vmem>>, vector<16x1xf32>
      tpu.vector_store %arg6[%c0_32, %c0_33], %45 {strides = array<i32>} : memref<16x1xf32, #tpu.memory_space<vmem>>, vector<16x1xf32>,
      %cst_34 = arith.constant 0.000000e+00 : f32
      %47 = vector.broadcast %cst_34 : f32 to vector<16x1xf32>
      %c0_35 = arith.constant 0 : index
      %c0_36 = arith.constant 0 : index
      %48 = vector.load %arg7[%c0_35, %c0_36] : memref<16x1xf32, #tpu.memory_space<vmem>>, vector<16x1xf32>
      tpu.vector_store %arg7[%c0_35, %c0_36], %47 {strides = array<i32>} : memref<16x1xf32, #tpu.memory_space<vmem>>, vector<16x1xf32>,
      %cst_37 = arith.constant 0.000000e+00 : f32
      %49 = vector.broadcast %cst_37 : f32 to vector<16x1xf32>
      %c0_38 = arith.constant 0 : index
      %c0_39 = arith.constant 0 : index
      %50 = vector.load %arg8[%c0_38, %c0_39] : memref<16x1xf32, #tpu.memory_space<vmem>>, vector<16x1xf32>
      tpu.vector_store %arg8[%c0_38, %c0_39], %49 {strides = array<i32>} : memref<16x1xf32, #tpu.memory_space<vmem>>, vector<16x1xf32>,
    } else {
    }
    %c0 = arith.constant 0 : index
    %c0_1 = arith.constant 0 : index
    %3 = vector.load %arg2[%c0, %c0_1] : memref<16x32xf32, #tpu.memory_space<vmem>>, vector<16x32xf32>
    %c0_2 = arith.constant 0 : index
    %c0_3 = arith.constant 0 : index
    %4 = vector.load %arg3[%c0_2, %c0_3] : memref<16x1xi32, #tpu.memory_space<vmem>>, vector<16x1xi32>
    %5 = tpu.iota {dimensions = array<i32: 1>} : vector<16x32xi32>
    %c32_i32 = arith.constant 32 : i32
    %6 = arith.muli %arg1, %c32_i32 : i32
    %7 = vector.broadcast %6 : i32 to vector<16x1xi32>
    %8 = arith.subi %4, %7 : vector<16x1xi32>
    %cst = arith.constant dense<0xFF800000> : vector<16xf32>
    %9 = vector.multi_reduction <maximumf>, %3, %cst [1] : vector<16x32xf32> to vector<16xf32>
    %10 = vector.shape_cast %9 : vector<16xf32> to vector<16x1xf32>
    %c0_4 = arith.constant 0 : index
    %c0_5 = arith.constant 0 : index
    %11 = vector.load %arg5[%c0_4, %c0_5] : memref<16x1xf32, #tpu.memory_space<vmem>>, vector<16x1xf32>
    %12 = arith.maximumf %11, %10 : vector<16x1xf32>
    %c0_6 = arith.constant 0 : index
    %c0_7 = arith.constant 0 : index
    %13 = vector.load %arg5[%c0_6, %c0_7] : memref<16x1xf32, #tpu.memory_space<vmem>>, vector<16x1xf32>
    %14 = arith.subf %13, %12 : vector<16x1xf32>
    %15 = math.exp %14 : vector<16x1xf32>
    %c0_8 = arith.constant 0 : index
    %c0_9 = arith.constant 0 : index
    %16 = vector.load %arg6[%c0_8, %c0_9] : memref<16x1xf32, #tpu.memory_space<vmem>>, vector<16x1xf32>
    %17 = arith.mulf %16, %15 : vector<16x1xf32>
    %18 = vector.broadcast %12 : vector<16x1xf32> to vector<16x32xf32>
    %19 = arith.subf %3, %18 : vector<16x32xf32>
    %20 = math.exp %19 : vector<16x32xf32>
    %cst_10 = arith.constant dense<0.000000e+00> : vector<16xf32>
    %21 = vector.multi_reduction <add>, %20, %cst_10 [1] : vector<16x32xf32> to vector<16xf32>
    %22 = vector.shape_cast %21 : vector<16xf32> to vector<16x1xf32>
    %23 = arith.addf %17, %22 : vector<16x1xf32>
    %c0_11 = arith.constant 0 : index
    %c0_12 = arith.constant 0 : index
    %24 = vector.load %arg6[%c0_11, %c0_12] : memref<16x1xf32, #tpu.memory_space<vmem>>, vector<16x1xf32>
    tpu.vector_store %arg6[%c0_11, %c0_12], %23 {strides = array<i32>} : memref<16x1xf32, #tpu.memory_space<vmem>>, vector<16x1xf32>,
    %c0_13 = arith.constant 0 : index
    %c0_14 = arith.constant 0 : index
    %25 = vector.load %arg5[%c0_13, %c0_14] : memref<16x1xf32, #tpu.memory_space<vmem>>, vector<16x1xf32>
    tpu.vector_store %arg5[%c0_13, %c0_14], %12 {strides = array<i32>} : memref<16x1xf32, #tpu.memory_space<vmem>>, vector<16x1xf32>,
    %c0_15 = arith.constant 0 : index
    %c0_16 = arith.constant 0 : index
    %26 = vector.load %arg7[%c0_15, %c0_16] : memref<16x1xf32, #tpu.memory_space<vmem>>, vector<16x1xf32>
    %cst_17 = arith.constant dense<0.000000e+00> : vector<16xf32>
    %27 = vector.multi_reduction <add>, %3, %cst_17 [1] : vector<16x32xf32> to vector<16xf32>
    %28 = vector.shape_cast %27 : vector<16xf32> to vector<16x1xf32>
    %29 = arith.addf %26, %28 : vector<16x1xf32>
    %c0_18 = arith.constant 0 : index
    %c0_19 = arith.constant 0 : index
    %30 = vector.load %arg7[%c0_18, %c0_19] : memref<16x1xf32, #tpu.memory_space<vmem>>, vector<16x1xf32>
    tpu.vector_store %arg7[%c0_18, %c0_19], %29 {strides = array<i32>} : memref<16x1xf32, #tpu.memory_space<vmem>>, vector<16x1xf32>,
    %c0_20 = arith.constant 0 : index
    %c0_21 = arith.constant 0 : index
    %31 = vector.load %arg8[%c0_20, %c0_21] : memref<16x1xf32, #tpu.memory_space<vmem>>, vector<16x1xf32>
    %32 = vector.broadcast %8 : vector<16x1xi32> to vector<16x32xi32>
    %33 = arith.cmpi eq, %5, %32 : vector<16x32xi32>
    %cst_22 = arith.constant 0.000000e+00 : f32
    %34 = vector.broadcast %cst_22 : f32 to vector<16x32xf32>
    %35 = arith.select %33, %3, %34 : vector<16x32xi1>, vector<16x32xf32>
    %cst_23 = arith.constant dense<0.000000e+00> : vector<16xf32>
    %36 = vector.multi_reduction <add>, %35, %cst_23 [1] : vector<16x32xf32> to vector<16xf32>
    %37 = vector.shape_cast %36 : vector<16xf32> to vector<16x1xf32>
    %38 = arith.addf %31, %37 : vector<16x1xf32>
    %c0_24 = arith.constant 0 : index
    %c0_25 = arith.constant 0 : index
    %39 = vector.load %arg8[%c0_24, %c0_25] : memref<16x1xf32, #tpu.memory_space<vmem>>, vector<16x1xf32>
    tpu.vector_store %arg8[%c0_24, %c0_25], %38 {strides = array<i32>} : memref<16x1xf32, #tpu.memory_space<vmem>>, vector<16x1xf32>,
    %c0_i32_26 = arith.constant 0 : i32
    %40 = arith.cmpi eq, %arg1, %c0_i32_26 : i32
    %41 = arith.extui %40 : i1 to i32
    %c0_i32_27 = arith.constant 0 : i32
    %42 = arith.cmpi ne, %41, %c0_i32_27 : i32
    scf.if %42 {
      %c0_28 = arith.constant 0 : index
      %c0_29 = arith.constant 0 : index
      %43 = vector.load %arg5[%c0_28, %c0_29] : memref<16x1xf32, #tpu.memory_space<vmem>>, vector<16x1xf32>
      %c0_30 = arith.constant 0 : index
      %c0_31 = arith.constant 0 : index
      %44 = vector.load %arg6[%c0_30, %c0_31] : memref<16x1xf32, #tpu.memory_space<vmem>>, vector<16x1xf32>
      %45 = math.log %44 : vector<16x1xf32>
      %46 = arith.addf %43, %45 : vector<16x1xf32>
      %c0_32 = arith.constant 0 : index
      %c0_33 = arith.constant 0 : index
      %47 = vector.load %arg8[%c0_32, %c0_33] : memref<16x1xf32, #tpu.memory_space<vmem>>, vector<16x1xf32>
      %cst_34 = arith.constant 9.900000e-01 : f32
      %48 = vector.broadcast %cst_34 : f32 to vector<16x1xf32>
      %49 = arith.mulf %48, %47 : vector<16x1xf32>
      %c0_35 = arith.constant 0 : index
      %c0_36 = arith.constant 0 : index
      %50 = vector.load %arg7[%c0_35, %c0_36] : memref<16x1xf32, #tpu.memory_space<vmem>>, vector<16x1xf32>
      %cst_37 = arith.constant 3.125000e-04 : f32
      %51 = vector.broadcast %cst_37 : f32 to vector<16x1xf32>
      %52 = arith.mulf %51, %50 : vector<16x1xf32>
      %53 = arith.addf %49, %52 : vector<16x1xf32>
      %54 = arith.subf %46, %53 : vector<16x1xf32>
      %55 = vector.shape_cast %54 : vector<16x1xf32> to vector<1x16x1xf32>
      %cst_38 = arith.constant dense<0.000000e+00> : vector<1xf32>
      %56 = vector.multi_reduction <add>, %55, %cst_38 [1, 2] : vector<1x16x1xf32> to vector<1xf32>
      %57 = vector.shape_cast %56 : vector<1xf32> to vector<1x1x1xf32>
      %58 = vector.extract %57[0, 0, 0] : f32 from vector<1x1x1xf32>
      %c0_39 = arith.constant 0 : index
      %c0_40 = arith.constant 0 : index
      %59 = memref.load %arg4[%c0_39, %c0_40] : memref<1x1xf32, #tpu.memory_space<smem>>
      memref.store %58, %arg4[%c0_39, %c0_40] : memref<1x1xf32, #tpu.memory_space<smem>>
    } else {
    }
    return
  }
  func.func @transform_0(%arg0: i32, %arg1: i32) -> (i32, i32) {
    %c0_i32 = arith.constant 0 : i32
    return %arg0, %arg1 : i32, i32
  }
  func.func @transform_1(%arg0: i32, %arg1: i32) -> (i32, i32) {
    %c0_i32 = arith.constant 0 : i32
    %c0_i32_0 = arith.constant 0 : i32
    return %arg0, %c0_i32 : i32, i32
  }
  func.func @transform_2(%arg0: i32, %arg1: i32) -> (i32, i32) {
    %c0_i32 = arith.constant 0 : i32
    %c0_i32_0 = arith.constant 0 : i32
    return %arg0, %c0_i32 : i32, i32
  }
}

</mosaic_0001>

<llo_original>
// kernel: tpu_custom_call.1
$region0: #{tpu_custom_call.1}
  #allocation0 [shape = 'u32[]', space=smem, size = 0x4, offset = 0x4, fixed_abs, tag = 'smem constant byte address 0x4 - core index']
  #allocation1 [shape = 'u32[144,128]{1,0:T(1,128)}', space=vmem, size = 0x12000, scoped, tag = 'internal scratch']
  #allocation2 [shape = 'f32[16,1]{1,0:T(8,128)}', space=vmem, size = 0x2000, scoped, tag = 'scratch operand']
  #allocation3 [shape = 'f32[16,1]{1,0:T(8,128)}', space=vmem, size = 0x2000, scoped, tag = 'scratch operand']
  #allocation4 [shape = 'f32[16,1]{1,0:T(8,128)}', space=vmem, size = 0x2000, scoped, tag = 'scratch operand']
  #allocation5 [shape = 'f32[16,1]{1,0:T(8,128)}', space=vmem, size = 0x2000, scoped, tag = 'scratch operand']
  %s0 = inlined_call_operand.vmem [shape: f32[16,32], index: 0, kind: input, shape index: {}]
  %s1 = inlined_call_operand.vmem [shape: s32[16,1], index: 1, kind: input, shape index: {}]
  %s2 = inlined_call_operand.hbm [shape: f32[1,1], index: 2, kind: output, shape index: {}]
  %s3 = sld [smem:[#allocation0]]
  $region26: #{tpu_custom_call.1} parent=0
    _
  %s5 = ssub.s32 1, %s3
  %s6 = scalar_select 0, %s5, %s3
  $region1: #{tpu_custom_call.1} parent=0
    #allocation6 [shape = 'u8[512]{0}', space=smem, size = 0x200, scoped, tag = 'output window, operand 0, single buffered']
    #allocation7 [shape = 's32[1]{0}', space=sflag, size = 0x4, scoped, tag = 'scoped memory for tpu_custom_call.1']
    %7 = vsyncpa [#allocation7], 0
    // Predicated region
    $region2: #{tpu_custom_call.1} parent=1 // pred_check
      _
    $region3: #{tpu_custom_call.1} parent=1 // pred_check_branch
      %9 = sbr.rel (0) target = $region5
    $region4: #{tpu_custom_call.1} parent=1 // pred_region
      _
    $region5: #{tpu_custom_call.1} parent=1 // pred_fallthru
      _
    // Predicated region
    $region6: #{tpu_custom_call.1} parent=1 // pred_check
      _
    $region7: #{tpu_custom_call.1} parent=1 // pred_check_branch
      %11 = sbr.rel (0) target = $region9
    $region8: #{tpu_custom_call.1} parent=1 // pred_region
      _
    $region9: #{tpu_custom_call.1} parent=1 // pred_fallthru
      _
    %p12 = scmp.eq.s32.totalorder 0, 0
    // Predicated region
    $region10: #{tpu_custom_call.1} parent=1 // pred_check
      %p13 = pneg %p12
    $region11: #{tpu_custom_call.1} parent=1 // pred_check_branch
      %15 = sbr.rel (%p13) target = $region13
    $region12: #{tpu_custom_call.1} parent=1 // pred_region
      %vm16 = vcmask 7168
      %17 = vst.msk [vmem:[#allocation2] sm:$0xff] %vm16, -inf
      %18 = vst.msk [vmem:[#allocation2 + $0x8] sm:$0xff] %vm16, -inf
      %19 = vst.msk [vmem:[#allocation3] sm:$0xff] %vm16, 0.0
      %20 = vst.msk [vmem:[#allocation3 + $0x8] sm:$0xff] %vm16, 0.0
      %21 = vst.msk [vmem:[#allocation4] sm:$0xff] %vm16, 0.0
      %22 = vst.msk [vmem:[#allocation4 + $0x8] sm:$0xff] %vm16, 0.0
      %23 = vst.msk [vmem:[#allocation5] sm:$0xff] %vm16, 0.0
      %24 = vst.msk [vmem:[#allocation5 + $0x8] sm:$0xff] %vm16, 0.0
    $region13: #{tpu_custom_call.1} parent=1 // pred_fallthru
      _
    %v25 = vld [vmem:[%s0] sm:$0xff]
    %v26 = vld [vmem:[%s0 + $0x8] sm:$0xff]
    %v27 = vld [vmem:[%s1] sm:$0xff]
    %v28 = vld [vmem:[%s1 + $0x8] sm:$0xff]
    %v29 = vlaneseq
    %v30 = vand.u32 %v29, 127
    %s31 = smul.u32 0, 32
    %v32 = vstv %s31
    %v33 = vsub.s32 %v27, %v32
    %v34 = vsub.s32 %v28, %v32
    %vm35 = vcmask 261120
    %v36 = vsel %vm35, %v25, -inf
    %37 = vmax.xlane.f32.xlu0 %v36
    %v38 = vpop.xlane.xlu0 %37
    %v39 = vsel %vm35, %v26, -inf
    %40 = vmax.xlane.f32.xlu0 %v39
    %v41 = vpop.xlane.xlu0 %40
    %v42 = vld [vmem:[#allocation2] sm:$0xff]
    %v43 = vld [vmem:[#allocation2 + $0x8] sm:$0xff]
    %v44 = vmax.f32 %v42, %v38
    %v45 = vmax.f32 %v43, %v41
    %v46 = vsub.f32 %v42, %v44
    %v47 = vsub.f32 %v43, %v45
    %v48 = vmul.f32 %v46, 1.442695
    %v49 = vpow.pop %v48
    %v50 = vmul.f32 %v47, 1.442695
    %v51 = vpow.pop %v50
    %v52 = vld [vmem:[#allocation3] sm:$0xff]
    %v53 = vld [vmem:[#allocation3 + $0x8] sm:$0xff]
    %v54 = vmul.f32 %v52, %v49
    %v55 = vmul.f32 %v53, %v51
    %57 = vset.pattern.permute.xlu0 0
    %58 = vperm.xlu0 %57, %v44
    %v59 = vpop.permute.xlu0 %58
    %62 = vset.pattern.permute.xlu0 0
    %63 = vperm.xlu0 %62, %v45
    %v64 = vpop.permute.xlu0 %63
    %v66 = vsub.f32 %v25, %v59
    %v67 = vsub.f32 %v26, %v64
    %v68 = vmul.f32 %v66, 1.442695
    %v69 = vpow.pop %v68
    %v70 = vmul.f32 %v67, 1.442695
    %v71 = vpow.pop %v70
    %v72 = vsel %vm35, %v69, 0.0
    %73 = vadd.xlane.f32.xlu0 %v72
    %v74 = vpop.xlane.xlu0 %73
    %v75 = vsel %vm35, %v71, 0.0
    %76 = vadd.xlane.f32.xlu0 %v75
    %v77 = vpop.xlane.xlu0 %76
    %v78 = vadd.f32 %v54, %v74
    %v79 = vadd.f32 %v55, %v77
    %vm80 = vcmask 7168
    %81 = vst.msk [vmem:[#allocation3] sm:$0xff] %vm80, %v78
    %82 = vst.msk [vmem:[#allocation3 + $0x8] sm:$0xff] %vm80, %v79
    %83 = vst.msk [vmem:[#allocation2] sm:$0xff] %vm80, %v44
    %84 = vst.msk [vmem:[#allocation2 + $0x8] sm:$0xff] %vm80, %v45
    %v85 = vld [vmem:[#allocation4] sm:$0xff]
    %v86 = vld [vmem:[#allocation4 + $0x8] sm:$0xff]
    %v87 = vsel %vm35, %v25, 0.0
    %88 = vadd.xlane.f32.xlu0 %v87
    %v89 = vpop.xlane.xlu0 %88
    %v90 = vsel %vm35, %v26, 0.0
    %91 = vadd.xlane.f32.xlu0 %v90
    %v92 = vpop.xlane.xlu0 %91
    %v93 = vadd.f32 %v85, %v89
    %v94 = vadd.f32 %v86, %v92
    %95 = vst.msk [vmem:[#allocation4] sm:$0xff] %vm80, %v93
    %96 = vst.msk [vmem:[#allocation4 + $0x8] sm:$0xff] %vm80, %v94
    %v97 = vld [vmem:[#allocation5] sm:$0xff]
    %v98 = vld [vmem:[#allocation5 + $0x8] sm:$0xff]
    %99 = vset.pattern.permute.xlu0 0
    %100 = vperm.xlu0 %99, %v33
    %v101 = vpop.permute.xlu0 %100
    %102 = vset.pattern.permute.xlu0 0
    %103 = vperm.xlu0 %102, %v34
    %v104 = vpop.permute.xlu0 %103
    %vm105 = vcmp.eq.s32.totalorder %v30, %v101
    %vm106 = vcmp.eq.s32.totalorder %v30, %v104
    %v107 = vsel %vm105, %v25, 0.0
    %v108 = vsel %vm106, %v26, 0.0
    %v109 = vsel %vm35, %v107, 0.0
    %110 = vadd.xlane.f32.xlu0 %v109
    %v111 = vpop.xlane.xlu0 %110
    %v112 = vsel %vm35, %v108, 0.0
    %113 = vadd.xlane.f32.xlu0 %v112
    %v114 = vpop.xlane.xlu0 %113
    %v115 = vadd.f32 %v97, %v111
    %v116 = vadd.f32 %v98, %v114
    %117 = vst.msk [vmem:[#allocation5] sm:$0xff] %vm80, %v115
    %118 = vst.msk [vmem:[#allocation5 + $0x8] sm:$0xff] %vm80, %v116
    // Predicated region
    $region14: #{tpu_custom_call.1} parent=1 // pred_check
      %p119 = pneg %p12
    $region15: #{tpu_custom_call.1} parent=1 // pred_check_branch
      %121 = sbr.rel (%p119) target = $region17
    $region16: #{tpu_custom_call.1} parent=1 // pred_region
      %v122 = vld [vmem:[#allocation2] sm:$0xff]
      %v123 = vld [vmem:[#allocation2 + $0x8] sm:$0xff]
      %v124 = vld [vmem:[#allocation3] sm:$0xff]
      %v125 = vld [vmem:[#allocation3 + $0x8] sm:$0xff]
      %v126 = vlog2.pop %v124
      %v127 = vmul.f32 %v126, 0.6931472
      %v128 = vlog2.pop %v125
      %v129 = vmul.f32 %v128, 0.6931472
      %v130 = vadd.f32 %v122, %v127
      %v131 = vadd.f32 %v123, %v129
      %v132 = vld [vmem:[#allocation5] sm:$0xff]
      %v133 = vld [vmem:[#allocation5 + $0x8] sm:$0xff]
      %v134 = vmul.f32 %v132, 0.99
      %v135 = vmul.f32 %v133, 0.99
      %v136 = vld [vmem:[#allocation4] sm:$0xff]
      %v137 = vld [vmem:[#allocation4 + $0x8] sm:$0xff]
      %v138 = vmul.f32 %v136, 0.0003125
      %v139 = vmul.f32 %v137, 0.0003125
      %v140 = vadd.f32 %v134, %v138
      %v141 = vadd.f32 %v135, %v139
      %v142 = vsub.f32 %v130, %v140
      %v143 = vsub.f32 %v131, %v141
      %v144 = vsel %vm80, %v142, 0.0
      %v145 = vsel %vm80, %v143, 0.0
      %v146 = vadd.f32 %v144, %v145
      %147 = vadd.xlane.f32.xlu0 %v146
      %v148 = vpop.xlane.xlu0 %147
      %v149 = vrot.slane %v148, 4
      %v150 = vadd.f32 %v148, %v149
      %v151 = vrot.slane %v150, 2
      %v152 = vadd.f32 %v150, %v151
      %v153 = vrot.slane %v152, 1
      %v154 = vadd.f32 %v152, %v153
      %s155 = vtos %v154
      %s156 = scalar_lea.smem [#allocation6], 0
      %157 = sst [smem:[%s156]] %s155
    $region17: #{tpu_custom_call.1} parent=1 // pred_fallthru
      _
    // Predicated region
    $region18: #{tpu_custom_call.1} parent=1 // pred_check
      _
    $region19: #{tpu_custom_call.1} parent=1 // pred_check_branch
      %159 = sbr.rel (0) target = $region21
    $region20: #{tpu_custom_call.1} parent=1 // pred_region
      %s161 = ssub.s32 16, 16
      %162 = vsyncadd [#allocation7], %s161
      %165 = dma.smem_to_hbm [#allocation6], 16, %s2, [#allocation7]
    $region21: #{tpu_custom_call.1} parent=1 // pred_fallthru
      _
    // Predicated region
    $region22: #{tpu_custom_call.1} parent=1 // pred_check
      _
    $region23: #{tpu_custom_call.1} parent=1 // pred_check_branch
      %167 = sbr.rel (0) target = $region25
    $region24: #{tpu_custom_call.1} parent=1 // pred_region
      %168 = dma.done [#allocation7], 16
    $region25: #{tpu_custom_call.1} parent=1 // pred_fallthru
      _
    %169 = sfence
    %170 = vsyncpa [#allocation7], 1

</llo_original>
